<compile_context>
chip_gen: v5e
topology: v5e:2x2
jax: 0.10.0
libtpu: 0.0.40
codegen_flags: <defaults>
</compile_context>

<pallas_src>
import math
import jax
import jax.numpy as jnp
from jax.experimental import pallas as pl
from jax.experimental.pallas import tpu as pltpu


def _make_fused_sae_kernel(n_layers):
    """Kernel body computing the full Linear+ReLU chain on one batch tile.

    refs = (x_ref, w0, b0, w1, b1, ..., w_{L-1}, b_{L-1}, o_ref).
    Weights/biases are whole arrays (VMEM-resident, constant block index);
    intermediates never touch HBM; only the final tile is stored.
    """

    def kernel(*refs):
        x_ref = refs[0]
        o_ref = refs[-1]
        params = refs[1:-1]
        h = x_ref[...]
        for i in range(n_layers):
            w = params[2 * i][...]
            b = params[2 * i + 1][...]          # (1, N) -> broadcasts over rows
            h = jnp.maximum(
                jnp.dot(h, w, preferred_element_type=jnp.float32) + b, 0.0
            )
            # TODO(synk): training-mode Dropout(p=0.5) after encoder layers
            # (pltpu.prng_seed + pltpu.prng_random_bits mask) not implemented;
            # inference-mode dropout is the identity.
        o_ref[...] = h.astype(o_ref.dtype)

    return kernel


def sae_forward(x, enc_params, dec_params, *, tm_max=128):
    """Fused SAE forward: relu(x@W+b) for every encoder + decoder layer,
    computed in a single Pallas kernel with all weights resident in VMEM.

    x: (M, nb_movies) f32; params: list of (W (in,out) f32, b (out,) f32).
    """
    params = list(enc_params) + list(dec_params)
    n_layers = len(params)
    M, K_in = x.shape
    N_out = params[-1][0].shape[1]

    # Batch tile: whole batch if small, else 128-row tiles (falls back to the
    # full extent when M is not a multiple of the tile).
    tm = M if M <= tm_max else tm_max
    if M % tm != 0:
        tm = M
    grid = (M // tm,)

    # Sanity: the fused weights must comfortably fit in scoped VMEM (true for
    # any realistic SAE hidden stack; ~320 KiB at these sizes).
    total_param_bytes = sum(W.size * 4 + b.size * 4 for (W, b) in params)
    assert total_param_bytes < 24 * 1024 * 1024, "weights too large to fuse in VMEM"

    args = [x]
    in_specs = [pl.BlockSpec((tm, K_in), lambda i: (i, 0))]
    for (W, b) in params:
        Kl, Nl = W.shape
        args.append(W)
        in_specs.append(pl.BlockSpec((Kl, Nl), lambda i: (0, 0)))   # resident
        args.append(b.reshape(1, Nl))
        in_specs.append(pl.BlockSpec((1, Nl), lambda i: (0, 0)))    # resident

    return pl.pallas_call(
        _make_fused_sae_kernel(n_layers),
        out_shape=jax.ShapeDtypeStruct((M, N_out), x.dtype),
        grid_spec=pltpu.PrefetchScalarGridSpec(
            num_scalar_prefetch=0,
            grid=grid,
            in_specs=in_specs,
            out_specs=pl.BlockSpec((tm, N_out), lambda i: (i, 0)),
        ),
        compiler_params=pltpu.CompilerParams(
            dimension_semantics=("parallel",),
        ),
    )(*args)


def init_sae_params(nb_movies, layers, key):
    """Deterministic init mirroring nn.Linear's default U(-1/sqrt(in), 1/sqrt(in)).

    Returns (encoder_params, decoder_params); each W is stored as (in, out).
    """
    sizes = []
    in_size = nb_movies
    for out_size in layers:                      # encoder
        sizes.append((in_size, out_size))
        in_size = out_size
    rev = list(reversed(layers))                 # decoder (skip bottleneck)
    for out_size in rev[1:] + [nb_movies]:
        sizes.append((in_size, out_size))
        in_size = out_size

    params = []
    for (fan_in, fan_out) in sizes:
        key, kw, kb = jax.random.split(key, 3)
        bound = 1.0 / math.sqrt(fan_in)
        W = jax.random.uniform(kw, (fan_in, fan_out), jnp.float32, -bound, bound)
        b = jax.random.uniform(kb, (fan_out,), jnp.float32, -bound, bound)
        params.append((W, b))
    n_enc = len(layers)
    return params[:n_enc], params[n_enc:]


if __name__ == "__main__":
    nb_movies = 256
    layers = [128, 64]      # encoder: 256 -> 128 -> 64 ; decoder: 64 -> 128 -> 256
    batch = 8

    key = jax.random.PRNGKey(0)
    key, kx, kp = jax.random.split(key, 3)
    x = jax.random.uniform(kx, (batch, nb_movies), jnp.float32, 0.0, 5.0)

    enc_params, dec_params = init_sae_params(nb_movies, layers, kp)

    out = sae_forward(x, enc_params, dec_params)
    out = jax.block_until_ready(out)

    # Pure-JAX reference check.
    ref = x
    for (W, b) in enc_params + dec_params:
        ref = jnp.maximum(ref @ W + b, 0.0)
    assert out.shape == (batch, nb_movies)
    assert jnp.allclose(out, ref, atol=1e-5, rtol=1e-5)

    print("KERNEL_OK")
</pallas_src>

<mosaic_0001>
module attributes {stable_mosaic.version = 11 : i64} {
  func.func @kernel(%arg0: i32, %arg1: memref<8x256xf32, #tpu.memory_space<vmem>>, %arg2: memref<256x128xf32, #tpu.memory_space<vmem>>, %arg3: memref<1x128xf32, #tpu.memory_space<vmem>>, %arg4: memref<128x64xf32, #tpu.memory_space<vmem>>, %arg5: memref<1x64xf32, #tpu.memory_space<vmem>>, %arg6: memref<64x128xf32, #tpu.memory_space<vmem>>, %arg7: memref<1x128xf32, #tpu.memory_space<vmem>>, %arg8: memref<128x256xf32, #tpu.memory_space<vmem>>, %arg9: memref<1x256xf32, #tpu.memory_space<vmem>>, %arg10: memref<8x256xf32, #tpu.memory_space<vmem>>) attributes {dimension_semantics = [#tpu.dimension_semantics<parallel>], iteration_bounds = array<i64: 1>, scalar_prefetch = 0 : i64, scratch_operands = 0 : i64, tpu.core_type = #tpu.core_type<tc>, window_params = [{transform_indices = @transform_0, window_bounds = array<i64: 8, 256>}, {pipeline_mode = #tpu.pipeline_mode<synchronous>, transform_indices = @transform_1, window_bounds = array<i64: 256, 128>}, {pipeline_mode = #tpu.pipeline_mode<synchronous>, transform_indices = @transform_2, window_bounds = array<i64: 1, 128>}, {pipeline_mode = #tpu.pipeline_mode<synchronous>, transform_indices = @transform_3, window_bounds = array<i64: 128, 64>}, {pipeline_mode = #tpu.pipeline_mode<synchronous>, transform_indices = @transform_4, window_bounds = array<i64: 1, 64>}, {pipeline_mode = #tpu.pipeline_mode<synchronous>, transform_indices = @transform_5, window_bounds = array<i64: 64, 128>}, {pipeline_mode = #tpu.pipeline_mode<synchronous>, transform_indices = @transform_6, window_bounds = array<i64: 1, 128>}, {pipeline_mode = #tpu.pipeline_mode<synchronous>, transform_indices = @transform_7, window_bounds = array<i64: 128, 256>}, {pipeline_mode = #tpu.pipeline_mode<synchronous>, transform_indices = @transform_8, window_bounds = array<i64: 1, 256>}, {transform_indices = @transform_9, window_bounds = array<i64: 8, 256>}]} {
    %c0 = arith.constant 0 : index
    %c0_0 = arith.constant 0 : index
    %0 = vector.load %arg1[%c0, %c0_0] : memref<8x256xf32, #tpu.memory_space<vmem>>, vector<8x256xf32>
    %c0_1 = arith.constant 0 : index
    %c0_2 = arith.constant 0 : index
    %1 = vector.load %arg2[%c0_1, %c0_2] : memref<256x128xf32, #tpu.memory_space<vmem>>, vector<256x128xf32>
    %c0_3 = arith.constant 0 : index
    %c0_4 = arith.constant 0 : index
    %2 = vector.load %arg3[%c0_3, %c0_4] : memref<1x128xf32, #tpu.memory_space<vmem>>, vector<1x128xf32>
    %cst = arith.constant dense<0.000000e+00> : vector<8x128xf32>
    %3 = tpu.matmul %0, %1, %cst {dimension_numbers = #tpu.dot_dimension_numbers<[1], [0], [0], [1], [0, 0, 1, 1], [], []>} : vector<8x256xf32>, vector<256x128xf32>, vector<8x128xf32> -> vector<8x128xf32>
    %4 = vector.broadcast %2 : vector<1x128xf32> to vector<8x128xf32>
    %5 = arith.addf %3, %4 : vector<8x128xf32>
    %cst_5 = arith.constant 0.000000e+00 : f32
    %6 = vector.broadcast %cst_5 : f32 to vector<8x128xf32>
    %7 = arith.maximumf %5, %6 : vector<8x128xf32>
    %c0_6 = arith.constant 0 : index
    %c0_7 = arith.constant 0 : index
    %8 = vector.load %arg4[%c0_6, %c0_7] : memref<128x64xf32, #tpu.memory_space<vmem>>, vector<128x64xf32>
    %c0_8 = arith.constant 0 : index
    %c0_9 = arith.constant 0 : index
    %9 = vector.load %arg5[%c0_8, %c0_9] : memref<1x64xf32, #tpu.memory_space<vmem>>, vector<1x64xf32>
    %cst_10 = arith.constant dense<0.000000e+00> : vector<8x64xf32>
    %10 = tpu.matmul %7, %8, %cst_10 {dimension_numbers = #tpu.dot_dimension_numbers<[1], [0], [0], [1], [0, 0, 1, 1], [], []>} : vector<8x128xf32>, vector<128x64xf32>, vector<8x64xf32> -> vector<8x64xf32>
    %11 = vector.broadcast %9 : vector<1x64xf32> to vector<8x64xf32>
    %12 = arith.addf %10, %11 : vector<8x64xf32>
    %cst_11 = arith.constant 0.000000e+00 : f32
    %13 = vector.broadcast %cst_11 : f32 to vector<8x64xf32>
    %14 = arith.maximumf %12, %13 : vector<8x64xf32>
    %c0_12 = arith.constant 0 : index
    %c0_13 = arith.constant 0 : index
    %15 = vector.load %arg6[%c0_12, %c0_13] : memref<64x128xf32, #tpu.memory_space<vmem>>, vector<64x128xf32>
    %c0_14 = arith.constant 0 : index
    %c0_15 = arith.constant 0 : index
    %16 = vector.load %arg7[%c0_14, %c0_15] : memref<1x128xf32, #tpu.memory_space<vmem>>, vector<1x128xf32>
    %cst_16 = arith.constant dense<0.000000e+00> : vector<8x128xf32>
    %17 = tpu.matmul %14, %15, %cst_16 {dimension_numbers = #tpu.dot_dimension_numbers<[1], [0], [0], [1], [0, 0, 1, 1], [], []>} : vector<8x64xf32>, vector<64x128xf32>, vector<8x128xf32> -> vector<8x128xf32>
    %18 = vector.broadcast %16 : vector<1x128xf32> to vector<8x128xf32>
    %19 = arith.addf %17, %18 : vector<8x128xf32>
    %cst_17 = arith.constant 0.000000e+00 : f32
    %20 = vector.broadcast %cst_17 : f32 to vector<8x128xf32>
    %21 = arith.maximumf %19, %20 : vector<8x128xf32>
    %c0_18 = arith.constant 0 : index
    %c0_19 = arith.constant 0 : index
    %22 = vector.load %arg8[%c0_18, %c0_19] : memref<128x256xf32, #tpu.memory_space<vmem>>, vector<128x256xf32>
    %c0_20 = arith.constant 0 : index
    %c0_21 = arith.constant 0 : index
    %23 = vector.load %arg9[%c0_20, %c0_21] : memref<1x256xf32, #tpu.memory_space<vmem>>, vector<1x256xf32>
    %cst_22 = arith.constant dense<0.000000e+00> : vector<8x256xf32>
    %24 = tpu.matmul %21, %22, %cst_22 {dimension_numbers = #tpu.dot_dimension_numbers<[1], [0], [0], [1], [0, 0, 1, 1], [], []>} : vector<8x128xf32>, vector<128x256xf32>, vector<8x256xf32> -> vector<8x256xf32>
    %25 = vector.broadcast %23 : vector<1x256xf32> to vector<8x256xf32>
    %26 = arith.addf %24, %25 : vector<8x256xf32>
    %cst_23 = arith.constant 0.000000e+00 : f32
    %27 = vector.broadcast %cst_23 : f32 to vector<8x256xf32>
    %28 = arith.maximumf %26, %27 : vector<8x256xf32>
    %c0_24 = arith.constant 0 : index
    %c0_25 = arith.constant 0 : index
    %29 = vector.load %arg10[%c0_24, %c0_25] : memref<8x256xf32, #tpu.memory_space<vmem>>, vector<8x256xf32>
    tpu.vector_store %arg10[%c0_24, %c0_25], %28 {strides = array<i32>} : memref<8x256xf32, #tpu.memory_space<vmem>>, vector<8x256xf32>,
    return
  }
  func.func @transform_0(%arg0: i32) -> (i32, i32) {
    %c0_i32 = arith.constant 0 : i32
    %c0_i32_0 = arith.constant 0 : i32
    return %arg0, %c0_i32 : i32, i32
  }
  func.func @transform_1(%arg0: i32) -> (i32, i32) {
    %c0_i32 = arith.constant 0 : i32
    %c0_i32_0 = arith.constant 0 : i32
    %c0_i32_1 = arith.constant 0 : i32
    return %c0_i32, %c0_i32_0 : i32, i32
  }
  func.func @transform_2(%arg0: i32) -> (i32, i32) {
    %c0_i32 = arith.constant 0 : i32
    %c0_i32_0 = arith.constant 0 : i32
    %c0_i32_1 = arith.constant 0 : i32
    return %c0_i32, %c0_i32_0 : i32, i32
  }
  func.func @transform_3(%arg0: i32) -> (i32, i32) {
    %c0_i32 = arith.constant 0 : i32
    %c0_i32_0 = arith.constant 0 : i32
    %c0_i32_1 = arith.constant 0 : i32
    return %c0_i32, %c0_i32_0 : i32, i32
  }
  func.func @transform_4(%arg0: i32) -> (i32, i32) {
    %c0_i32 = arith.constant 0 : i32
    %c0_i32_0 = arith.constant 0 : i32
    %c0_i32_1 = arith.constant 0 : i32
    return %c0_i32, %c0_i32_0 : i32, i32
  }
  func.func @transform_5(%arg0: i32) -> (i32, i32) {
    %c0_i32 = arith.constant 0 : i32
    %c0_i32_0 = arith.constant 0 : i32
    %c0_i32_1 = arith.constant 0 : i32
    return %c0_i32, %c0_i32_0 : i32, i32
  }
  func.func @transform_6(%arg0: i32) -> (i32, i32) {
    %c0_i32 = arith.constant 0 : i32
    %c0_i32_0 = arith.constant 0 : i32
    %c0_i32_1 = arith.constant 0 : i32
    return %c0_i32, %c0_i32_0 : i32, i32
  }
  func.func @transform_7(%arg0: i32) -> (i32, i32) {
    %c0_i32 = arith.constant 0 : i32
    %c0_i32_0 = arith.constant 0 : i32
    %c0_i32_1 = arith.constant 0 : i32
    return %c0_i32, %c0_i32_0 : i32, i32
  }
  func.func @transform_8(%arg0: i32) -> (i32, i32) {
    %c0_i32 = arith.constant 0 : i32
    %c0_i32_0 = arith.constant 0 : i32
    %c0_i32_1 = arith.constant 0 : i32
    return %c0_i32, %c0_i32_0 : i32, i32
  }
  func.func @transform_9(%arg0: i32) -> (i32, i32) {
    %c0_i32 = arith.constant 0 : i32
    %c0_i32_0 = arith.constant 0 : i32
    return %arg0, %c0_i32 : i32, i32
  }
}

</mosaic_0001>

<llo_original>
// kernel: tpu_custom_call.1
$region0: #{tpu_custom_call.1}
  #allocation0 [shape = 'u32[]', space=smem, size = 0x4, offset = 0x4, fixed_abs, tag = 'smem constant byte address 0x4 - core index']
  #allocation1 [shape = 'u32[72,128]{1,0:T(1,128)}', space=vmem, size = 0x9000, scoped, tag = 'internal scratch']
  %s0 = inlined_call_operand.vmem [shape: f32[8,256], index: 0, kind: input, shape index: {}]
  %s1 = inlined_call_operand.hbm [shape: f32[256,128], index: 1, kind: input, shape index: {}]
  %s2 = inlined_call_operand.vmem [shape: f32[1,128], index: 2, kind: input, shape index: {}]
  %s3 = inlined_call_operand.vmem [shape: f32[128,64], index: 3, kind: input, shape index: {}]
  %s4 = inlined_call_operand.vmem [shape: f32[1,64], index: 4, kind: input, shape index: {}]
  %s5 = inlined_call_operand.vmem [shape: f32[64,128], index: 5, kind: input, shape index: {}]
  %s6 = inlined_call_operand.vmem [shape: f32[1,128], index: 6, kind: input, shape index: {}]
  %s7 = inlined_call_operand.hbm [shape: f32[128,256], index: 7, kind: input, shape index: {}]
  %s8 = inlined_call_operand.vmem [shape: f32[1,256], index: 8, kind: input, shape index: {}]
  %s9 = inlined_call_operand.hbm [shape: f32[8,256], index: 9, kind: output, shape index: {}]
  %s10 = sld [smem:[#allocation0]]
  $region54: #{tpu_custom_call.1} parent=0
    _
  %s12 = ssub.s32 1, %s10
  %s13 = scalar_select 0, %s12, %s10
  $region1: #{tpu_custom_call.1} parent=0
    #allocation2 [shape = 'u8[131072]{0}', space=vmem, size = 0x20000, scoped, tag = 'input window, operand 1, single buffered']
    #allocation3 [shape = 's32[1]{0}', space=sflag, size = 0x4, scoped, tag = 'scoped memory for tpu_custom_call.1']
    #allocation4 [shape = 's32[1]{0}', space=sflag, size = 0x4, scoped, tag = 'scoped memory for tpu_custom_call.1']
    #allocation5 [shape = 'u8[131072]{0}', space=vmem, size = 0x20000, scoped, tag = 'input window, operand 7, single buffered']
    #allocation6 [shape = 's32[1]{0}', space=sflag, size = 0x4, scoped, tag = 'scoped memory for tpu_custom_call.1']
    #allocation7 [shape = 'u8[8192]{0}', space=vmem, size = 0x2000, scoped, tag = 'output window, operand 0, single buffered']
    %14 = vsyncpa [#allocation3], 0
    %15 = vsyncpa [#allocation6], 0
    %16 = vsyncpa [#allocation4], 0
    // Predicated region
    $region2: #{tpu_custom_call.1} parent=1 // pred_check
      _
    $region3: #{tpu_custom_call.1} parent=1 // pred_check_branch
      %18 = sbr.rel (0) target = $region5
    $region4: #{tpu_custom_call.1} parent=1 // pred_region
      _
    $region5: #{tpu_custom_call.1} parent=1 // pred_fallthru
      _
    // Predicated region
    $region6: #{tpu_custom_call.1} parent=1 // pred_check
      _
    $region7: #{tpu_custom_call.1} parent=1 // pred_check_branch
      %20 = sbr.rel (0) target = $region9
    $region8: #{tpu_custom_call.1} parent=1 // pred_region
      %22 = vsyncadd [#allocation3], 0
      %s23 = sshll.u32 %s1, 4
      %s24 = int_to_ptr.hbm [resolvable:$true] %s23
      %s25 = sshll.u32 [#allocation2], 4
      %s26 = int_to_ptr.vmem [resolvable:$true] %s25
      %31 = dma.hbm_to_vmem [thread:$0]  %s24, 4096, %s26, [#allocation3], 128, 128, 8
    $region9: #{tpu_custom_call.1} parent=1 // pred_fallthru
      _
    // Predicated region
    $region10: #{tpu_custom_call.1} parent=1 // pred_check
      _
    $region11: #{tpu_custom_call.1} parent=1 // pred_check_branch
      %33 = sbr.rel (0) target = $region13
    $region12: #{tpu_custom_call.1} parent=1 // pred_region
      _
    $region13: #{tpu_custom_call.1} parent=1 // pred_fallthru
      _
    // Predicated region
    $region14: #{tpu_custom_call.1} parent=1 // pred_check
      _
    $region15: #{tpu_custom_call.1} parent=1 // pred_check_branch
      %35 = sbr.rel (0) target = $region17
    $region16: #{tpu_custom_call.1} parent=1 // pred_region
      _
    $region17: #{tpu_custom_call.1} parent=1 // pred_fallthru
      _
    // Predicated region
    $region18: #{tpu_custom_call.1} parent=1 // pred_check
      _
    $region19: #{tpu_custom_call.1} parent=1 // pred_check_branch
      %37 = sbr.rel (0) target = $region21
    $region20: #{tpu_custom_call.1} parent=1 // pred_region
      _
    $region21: #{tpu_custom_call.1} parent=1 // pred_fallthru
      _
    // Predicated region
    $region22: #{tpu_custom_call.1} parent=1 // pred_check
      _
    $region23: #{tpu_custom_call.1} parent=1 // pred_check_branch
      %39 = sbr.rel (0) target = $region25
    $region24: #{tpu_custom_call.1} parent=1 // pred_region
      _
    $region25: #{tpu_custom_call.1} parent=1 // pred_fallthru
      _
    // Predicated region
    $region26: #{tpu_custom_call.1} parent=1 // pred_check
      _
    $region27: #{tpu_custom_call.1} parent=1 // pred_check_branch
      %41 = sbr.rel (0) target = $region29
    $region28: #{tpu_custom_call.1} parent=1 // pred_region
      _
    $region29: #{tpu_custom_call.1} parent=1 // pred_fallthru
      _
    // Predicated region
    $region30: #{tpu_custom_call.1} parent=1 // pred_check
      _
    $region31: #{tpu_custom_call.1} parent=1 // pred_check_branch
      %43 = sbr.rel (0) target = $region33
    $region32: #{tpu_custom_call.1} parent=1 // pred_region
      %45 = vsyncadd [#allocation6], 0
      %s46 = sshll.u32 %s7, 4
      %s47 = int_to_ptr.hbm [resolvable:$true] %s46
      %s48 = sshll.u32 [#allocation5], 4
      %s49 = int_to_ptr.vmem [resolvable:$true] %s48
      %54 = dma.hbm_to_vmem [thread:$0]  %s47, 4096, %s49, [#allocation6], 256, 256, 16
    $region33: #{tpu_custom_call.1} parent=1 // pred_fallthru
      _
    // Predicated region
    $region34: #{tpu_custom_call.1} parent=1 // pred_check
      _
    $region35: #{tpu_custom_call.1} parent=1 // pred_check_branch
      %56 = sbr.rel (0) target = $region37
    $region36: #{tpu_custom_call.1} parent=1 // pred_region
      _
    $region37: #{tpu_custom_call.1} parent=1 // pred_fallthru
      _
    // Predicated region
    $region38: #{tpu_custom_call.1} parent=1 // pred_check
      _
    $region39: #{tpu_custom_call.1} parent=1 // pred_check_branch
      %58 = sbr.rel (0) target = $region41
    $region40: #{tpu_custom_call.1} parent=1 // pred_region
      %60 = dma.done [#allocation3], 4096
    $region41: #{tpu_custom_call.1} parent=1 // pred_fallthru
      _
    // Predicated region
    $region42: #{tpu_custom_call.1} parent=1 // pred_check
      _
    $region43: #{tpu_custom_call.1} parent=1 // pred_check_branch
      %62 = sbr.rel (0) target = $region45
    $region44: #{tpu_custom_call.1} parent=1 // pred_region
      %64 = dma.done [#allocation6], 4096
    $region45: #{tpu_custom_call.1} parent=1 // pred_fallthru
      _
    %v65 = vld [vmem:[%s0] sm:$0xff]
    %v66 = vld [vmem:[%s0 + $0x8] sm:$0xff]
    %v67 = vld [vmem:[#allocation2] sm:$0xff]
    %v68 = vld [vmem:[#allocation2 + $0x8] sm:$0xff]
    %v69 = vld [vmem:[#allocation2 + $0x10] sm:$0xff]
    %v70 = vld [vmem:[#allocation2 + $0x18] sm:$0xff]
    %v71 = vld [vmem:[#allocation2 + $0x20] sm:$0xff]
    %v72 = vld [vmem:[#allocation2 + $0x28] sm:$0xff]
    %v73 = vld [vmem:[#allocation2 + $0x30] sm:$0xff]
    %v74 = vld [vmem:[#allocation2 + $0x38] sm:$0xff]
    %v75 = vld [vmem:[#allocation2 + $0x40] sm:$0xff]
    %v76 = vld [vmem:[#allocation2 + $0x48] sm:$0xff]
    %v77 = vld [vmem:[#allocation2 + $0x50] sm:$0xff]
    %v78 = vld [vmem:[#allocation2 + $0x58] sm:$0xff]
    %v79 = vld [vmem:[#allocation2 + $0x60] sm:$0xff]
    %v80 = vld [vmem:[#allocation2 + $0x68] sm:$0xff]
    %v81 = vld [vmem:[#allocation2 + $0x70] sm:$0xff]
    %v82 = vld [vmem:[#allocation2 + $0x78] sm:$0xff]
    %v83 = vld [vmem:[#allocation2 + $0x80] sm:$0xff]
    %v84 = vld [vmem:[#allocation2 + $0x88] sm:$0xff]
    %v85 = vld [vmem:[#allocation2 + $0x90] sm:$0xff]
    %v86 = vld [vmem:[#allocation2 + $0x98] sm:$0xff]
    %v87 = vld [vmem:[#allocation2 + $0xa0] sm:$0xff]
    %v88 = vld [vmem:[#allocation2 + $0xa8] sm:$0xff]
    %v89 = vld [vmem:[#allocation2 + $0xb0] sm:$0xff]
    %v90 = vld [vmem:[#allocation2 + $0xb8] sm:$0xff]
    %v91 = vld [vmem:[#allocation2 + $0xc0] sm:$0xff]
    %v92 = vld [vmem:[#allocation2 + $0xc8] sm:$0xff]
    %v93 = vld [vmem:[#allocation2 + $0xd0] sm:$0xff]
    %v94 = vld [vmem:[#allocation2 + $0xd8] sm:$0xff]
    %v95 = vld [vmem:[#allocation2 + $0xe0] sm:$0xff]
    %v96 = vld [vmem:[#allocation2 + $0xe8] sm:$0xff]
    %v97 = vld [vmem:[#allocation2 + $0xf0] sm:$0xff]
    %v98 = vld [vmem:[#allocation2 + $0xf8] sm:$0xff]
    %v99 = vld [vmem:[%s2] sm:$0x1]
    %v101 = vperm.slane %v99, 0
    %103 = vmatpush.msra.mxu0 %v82
    %104 = vmatpush.msra.mxu0 %v81
    %105 = vmatpush.msra.mxu0 %v80
    %106 = vmatpush.msra.mxu0 %v79
    %107 = vmatpush.msra.mxu0 %v78
    %108 = vmatpush.msra.mxu0 %v77
    %109 = vmatpush.msra.mxu0 %v76
    %110 = vmatpush.msra.mxu0 %v75
    %111 = vmatpush.msra.mxu0 %v74
    %112 = vmatpush.msra.mxu0 %v73
    %113 = vmatpush.msra.mxu0 %v72
    %114 = vmatpush.msra.mxu0 %v71
    %115 = vmatpush.msra.mxu0 %v70
    %116 = vmatpush.msra.mxu0 %v69
    %117 = vmatpush.msra.mxu0 %v68
    %118 = vmatpush.msra.mxu0 %v67
    %119 = vmatmul.f32.gmra.mxu0 %v65
    %v120 = vpop.f32.mrf.mxu0
    %v121 = vadd.f32 %v101, %v120
    %122 = vdwg.mxu0
    %123 = vmatpush.msra.mxu0 %v98
    %124 = vmatpush.msra.mxu0 %v97
    %125 = vmatpush.msra.mxu0 %v96
    %126 = vmatpush.msra.mxu0 %v95
    %127 = vmatpush.msra.mxu0 %v94
    %128 = vmatpush.msra.mxu0 %v93
    %129 = vmatpush.msra.mxu0 %v92
    %130 = vmatpush.msra.mxu0 %v91
    %131 = vmatpush.msra.mxu0 %v90
    %132 = vmatpush.msra.mxu0 %v89
    %133 = vmatpush.msra.mxu0 %v88
    %134 = vmatpush.msra.mxu0 %v87
    %135 = vmatpush.msra.mxu0 %v86
    %136 = vmatpush.msra.mxu0 %v85
    %137 = vmatpush.msra.mxu0 %v84
    %138 = vmatpush.msra.mxu0 %v83
    %139 = vmatmul.f32.gmra.mxu0 %v66
    %v140 = vpop.f32.mrf.mxu0
    %v141 = vadd.f32 %v121, %v140
    %142 = vdwg.mxu0
    %v143 = vmax.f32 %v141, 0.0
    %v144 = vld [vmem:[%s3] sm:$0xff]
    %v145 = vld [vmem:[%s3 + $0x8] sm:$0xff]
    %v146 = vld [vmem:[%s3 + $0x10] sm:$0xff]
    %v147 = vld [vmem:[%s3 + $0x18] sm:$0xff]
    %v148 = vld [vmem:[%s3 + $0x20] sm:$0xff]
    %v149 = vld [vmem:[%s3 + $0x28] sm:$0xff]
    %v150 = vld [vmem:[%s3 + $0x30] sm:$0xff]
    %v151 = vld [vmem:[%s3 + $0x38] sm:$0xff]
    %v152 = vld [vmem:[%s3 + $0x40] sm:$0xff]
    %v153 = vld [vmem:[%s3 + $0x48] sm:$0xff]
    %v154 = vld [vmem:[%s3 + $0x50] sm:$0xff]
    %v155 = vld [vmem:[%s3 + $0x58] sm:$0xff]
    %v156 = vld [vmem:[%s3 + $0x60] sm:$0xff]
    %v157 = vld [vmem:[%s3 + $0x68] sm:$0xff]
    %v158 = vld [vmem:[%s3 + $0x70] sm:$0xff]
    %v159 = vld [vmem:[%s3 + $0x78] sm:$0xff]
    %v160 = vld [vmem:[%s4] sm:$0x1]
    %v162 = vperm.slane %v160, 0
    %164 = vmatpush.msra.mxu0 %v159
    %165 = vmatpush.msra.mxu0 %v158
    %166 = vmatpush.msra.mxu0 %v157
    %167 = vmatpush.msra.mxu0 %v156
    %168 = vmatpush.msra.mxu0 %v155
    %169 = vmatpush.msra.mxu0 %v154
    %170 = vmatpush.msra.mxu0 %v153
    %171 = vmatpush.msra.mxu0 %v152
    %172 = vmatpush.msra.mxu0 %v151
    %173 = vmatpush.msra.mxu0 %v150
    %174 = vmatpush.msra.mxu0 %v149
    %175 = vmatpush.msra.mxu0 %v148
    %176 = vmatpush.msra.mxu0 %v147
    %177 = vmatpush.msra.mxu0 %v146
    %178 = vmatpush.msra.mxu0 %v145
    %179 = vmatpush.msra.mxu0 %v144
    %180 = vmatmul.f32.gmra.mxu0 %v143
    %v181 = vpop.f32.mrf.mxu0
    %v182 = vadd.f32 %v162, %v181
    %183 = vdwg.mxu0
    %v184 = vmax.f32 %v182, 0.0
    %v185 = vld [vmem:[%s5] sm:$0xff]
    %v186 = vld [vmem:[%s5 + $0x8] sm:$0xff]
    %v187 = vld [vmem:[%s5 + $0x10] sm:$0xff]
    %v188 = vld [vmem:[%s5 + $0x18] sm:$0xff]
    %v189 = vld [vmem:[%s5 + $0x20] sm:$0xff]
    %v190 = vld [vmem:[%s5 + $0x28] sm:$0xff]
    %v191 = vld [vmem:[%s5 + $0x30] sm:$0xff]
    %v192 = vld [vmem:[%s5 + $0x38] sm:$0xff]
    %v193 = vld [vmem:[%s6] sm:$0x1]
    %v195 = vperm.slane %v193, 0
    %vm197 = vcmask 523264
    %v199 = vsel %vm197, %v184, 0
    %201 = vmatpush.msra.mxu0 0.0
    %202 = vmatpush.msra.mxu0 0.0
    %203 = vmatpush.msra.mxu0 0.0
    %204 = vmatpush.msra.mxu0 0.0
    %205 = vmatpush.msra.mxu0 0.0
    %206 = vmatpush.msra.mxu0 0.0
    %207 = vmatpush.msra.mxu0 0.0
    %208 = vmatpush.msra.mxu0 0.0
    %209 = vmatpush.msra.mxu0 %v192
    %210 = vmatpush.msra.mxu0 %v191
    %211 = vmatpush.msra.mxu0 %v190
    %212 = vmatpush.msra.mxu0 %v189
    %213 = vmatpush.msra.mxu0 %v188
    %214 = vmatpush.msra.mxu0 %v187
    %215 = vmatpush.msra.mxu0 %v186
    %216 = vmatpush.msra.mxu0 %v185
    %217 = vmatmul.f32.gmra.mxu0 %v199
    %v218 = vpop.f32.mrf.mxu0
    %v219 = vadd.f32 %v195, %v218
    %220 = vdwg.mxu0
    %v221 = vmax.f32 %v219, 0.0
    %v222 = vld [vmem:[#allocation5] sm:$0xff]
    %v223 = vld [vmem:[#allocation5 + $0x8] sm:$0xff]
    %v224 = vld [vmem:[#allocation5 + $0x10] sm:$0xff]
    %v225 = vld [vmem:[#allocation5 + $0x18] sm:$0xff]
    %v226 = vld [vmem:[#allocation5 + $0x20] sm:$0xff]
    %v227 = vld [vmem:[#allocation5 + $0x28] sm:$0xff]
    %v228 = vld [vmem:[#allocation5 + $0x30] sm:$0xff]
    %v229 = vld [vmem:[#allocation5 + $0x38] sm:$0xff]
    %v230 = vld [vmem:[#allocation5 + $0x40] sm:$0xff]
    %v231 = vld [vmem:[#allocation5 + $0x48] sm:$0xff]
    %v232 = vld [vmem:[#allocation5 + $0x50] sm:$0xff]
    %v233 = vld [vmem:[#allocation5 + $0x58] sm:$0xff]
    %v234 = vld [vmem:[#allocation5 + $0x60] sm:$0xff]
    %v235 = vld [vmem:[#allocation5 + $0x68] sm:$0xff]
    %v236 = vld [vmem:[#allocation5 + $0x70] sm:$0xff]
    %v237 = vld [vmem:[#allocation5 + $0x78] sm:$0xff]
    %v238 = vld [vmem:[#allocation5 + $0x80] sm:$0xff]
    %v239 = vld [vmem:[#allocation5 + $0x88] sm:$0xff]
    %v240 = vld [vmem:[#allocation5 + $0x90] sm:$0xff]
    %v241 = vld [vmem:[#allocation5 + $0x98] sm:$0xff]
    %v242 = vld [vmem:[#allocation5 + $0xa0] sm:$0xff]
    %v243 = vld [vmem:[#allocation5 + $0xa8] sm:$0xff]
    %v244 = vld [vmem:[#allocation5 + $0xb0] sm:$0xff]
    %v245 = vld [vmem:[#allocation5 + $0xb8] sm:$0xff]
    %v246 = vld [vmem:[#allocation5 + $0xc0] sm:$0xff]
    %v247 = vld [vmem:[#allocation5 + $0xc8] sm:$0xff]
    %v248 = vld [vmem:[#allocation5 + $0xd0] sm:$0xff]
    %v249 = vld [vmem:[#allocation5 + $0xd8] sm:$0xff]
    %v250 = vld [vmem:[#allocation5 + $0xe0] sm:$0xff]
    %v251 = vld [vmem:[#allocation5 + $0xe8] sm:$0xff]
    %v252 = vld [vmem:[#allocation5 + $0xf0] sm:$0xff]
    %v253 = vld [vmem:[#allocation5 + $0xf8] sm:$0xff]
    %v254 = vld [vmem:[%s8] sm:$0x3]
    %v256 = vperm.slane %v254, 0
    %v257 = vperm.slane %v254, 1
    %260 = vmatpush.msra.mxu0 %v252
    %261 = vmatpush.msra.mxu0 %v250
    %262 = vmatpush.msra.mxu0 %v248
    %263 = vmatpush.msra.mxu0 %v246
    %264 = vmatpush.msra.mxu0 %v244
    %265 = vmatpush.msra.mxu0 %v242
    %266 = vmatpush.msra.mxu0 %v240
    %267 = vmatpush.msra.mxu0 %v238
    %268 = vmatpush.msra.mxu0 %v236
    %269 = vmatpush.msra.mxu0 %v234
    %270 = vmatpush.msra.mxu0 %v232
    %271 = vmatpush.msra.mxu0 %v230
    %272 = vmatpush.msra.mxu0 %v228
    %273 = vmatpush.msra.mxu0 %v226
    %274 = vmatpush.msra.mxu0 %v224
    %275 = vmatpush.msra.mxu0 %v222
    %276 = vmatmul.f32.gmra.mxu0 %v221
    %v277 = vpop.f32.mrf.mxu0
    %v278 = vadd.f32 %v256, %v277
    %279 = vdwg.mxu0
    %280 = vmatpush.msra.mxu0 %v253
    %281 = vmatpush.msra.mxu0 %v251
    %282 = vmatpush.msra.mxu0 %v249
    %283 = vmatpush.msra.mxu0 %v247
    %284 = vmatpush.msra.mxu0 %v245
    %285 = vmatpush.msra.mxu0 %v243
    %286 = vmatpush.msra.mxu0 %v241
    %287 = vmatpush.msra.mxu0 %v239
    %288 = vmatpush.msra.mxu0 %v237
    %289 = vmatpush.msra.mxu0 %v235
    %290 = vmatpush.msra.mxu0 %v233
    %291 = vmatpush.msra.mxu0 %v231
    %292 = vmatpush.msra.mxu0 %v229
    %293 = vmatpush.msra.mxu0 %v227
    %294 = vmatpush.msra.mxu0 %v225
    %295 = vmatpush.msra.mxu0 %v223
    %296 = vmatmul.f32.gmra.mxu0 %v221
    %v297 = vpop.f32.mrf.mxu0
    %v298 = vadd.f32 %v257, %v297
    %299 = vdwg.mxu0
    %v300 = vmax.f32 %v278, 0.0
    %v301 = vmax.f32 %v298, 0.0
    %302 = vst [vmem:[#allocation7] sm:$0xff] %v300
    %303 = vst [vmem:[#allocation7 + $0x8] sm:$0xff] %v301
    // Predicated region
    $region46: #{tpu_custom_call.1} parent=1 // pred_check
      _
    $region47: #{tpu_custom_call.1} parent=1 // pred_check_branch
      %305 = sbr.rel (0) target = $region49
    $region48: #{tpu_custom_call.1} parent=1 // pred_region
      %307 = vsyncadd [#allocation4], 0
      %s309 = sshll.u32 [#allocation7], 4
      %s310 = int_to_ptr.vmem [resolvable:$true] %s309
      %s311 = sshll.u32 %s9, 4
      %s312 = int_to_ptr.hbm [resolvable:$true] %s311
      %314 = dma.vmem_to_hbm [thread:$0]  %s310, 256, %s312, [#allocation4]
    $region49: #{tpu_custom_call.1} parent=1 // pred_fallthru
      _
    // Predicated region
    $region50: #{tpu_custom_call.1} parent=1 // pred_check
      _
    $region51: #{tpu_custom_call.1} parent=1 // pred_check_branch
      %316 = sbr.rel (0) target = $region53
    $region52: #{tpu_custom_call.1} parent=1 // pred_region
      %318 = dma.done [#allocation4], 256
    $region53: #{tpu_custom_call.1} parent=1 // pred_fallthru
      _
    %319 = vsyncpa [#allocation3], 1
    %320 = vsyncpa [#allocation6], 1
    %321 = vsyncpa [#allocation4], 1

</llo_original>
